<compile_context>
chip_gen: v5e
topology: v5e:2x2
jax: 0.10.0
libtpu: 0.0.40
codegen_flags: <defaults>
</compile_context>

<pallas_src>
import functools
import math

import jax
import jax.numpy as jnp
from jax.experimental import pallas as pl
from jax.experimental.pallas import tpu as pltpu

EPS = 1e-5  # PyTorch nn.LayerNorm default eps


def _addnorm_kernel(y_ref, g_ref, b_ref, o_ref):
    # y_ref: (tile_rows, H)   g_ref/b_ref: (1, H)   o_ref: (tile_rows, H)
    y = y_ref[...].astype(jnp.float32)
    gamma = g_ref[...].astype(jnp.float32)   # cast once per block
    beta = b_ref[...].astype(jnp.float32)

    mean = jnp.mean(y, axis=-1, keepdims=True)          # XLU reduce
    centered = y - mean
    var = jnp.mean(centered * centered, axis=-1, keepdims=True)
    inv = jax.lax.rsqrt(var + EPS)                       # EUP rsqrt (free slot)

    scale = inv * gamma                                  # fold gamma into the scale
    o_ref[...] = (centered * scale + beta).astype(o_ref.dtype)


def _choose_tile_rows(rows, hidden, itemsize):
    """Sublane-aligned row tile targeting ~4 MiB blocks, >= 2 grid steps,
    preferring an exact divisor of `rows` so no pad copy is needed."""
    packing = max(8, 32 // itemsize)          # 8 rows f32, 16 bf16, 32 int8/fp8
    target_block_bytes = 4 << 20              # ~4 MiB per block (fits all gens)
    target = max(packing, target_block_bytes // max(1, hidden * itemsize))
    target = (target // packing) * packing
    # Keep at least 2 grid steps so v7x's two TensorCores both get work.
    half = pl.cdiv(rows, 2)
    half = ((half + packing - 1) // packing) * packing
    target = max(packing, min(target, half))
    # Prefer a tile that divides rows exactly (avoids a wrapper-side pad copy).
    if rows % packing == 0:
        t = target
        while t >= packing:
            if rows % t == 0:
                return int(t)
            t -= packing
    return int(target)


@functools.partial(jax.jit, static_argnames=("tile_rows",))
def _add_norm_impl(y, gamma, beta, *, tile_rows):
    orig_shape = y.shape
    hidden = orig_shape[-1]
    rows = math.prod(orig_shape[:-1]) if len(orig_shape) > 1 else 1
    itemsize = jnp.dtype(y.dtype).itemsize

    y2 = y.reshape(rows, hidden)
    g2 = gamma.reshape(1, hidden)
    b2 = beta.reshape(1, hidden)

    # Pad rows up to a tile multiple only when the divisor search failed.
    padded_rows = pl.cdiv(rows, tile_rows) * tile_rows
    if padded_rows != rows:
        y2 = jnp.pad(y2, ((0, padded_rows - rows), (0, 0)))

    grid = padded_rows // tile_rows
    block_bytes = tile_rows * hidden * itemsize
    # Double-buffered in + out blocks, resident gamma/beta, + 1 MiB headroom.
    needed = 4 * block_bytes + 4 * hidden * itemsize + (1 << 20)
    vmem_limit = int(min(48 << 20, max(needed, 16 << 20)))  # cap for v7x (64 MiB VMEM)

    out = pl.pallas_call(
        _addnorm_kernel,
        out_shape=jax.ShapeDtypeStruct((padded_rows, hidden), y.dtype),
        grid_spec=pltpu.PrefetchScalarGridSpec(
            num_scalar_prefetch=0,
            grid=(grid,),
            in_specs=[
                pl.BlockSpec((tile_rows, hidden), lambda i: (i, 0)),
                pl.BlockSpec((1, hidden), lambda i: (0, 0)),  # gamma: VMEM-resident
                pl.BlockSpec((1, hidden), lambda i: (0, 0)),  # beta:  VMEM-resident
            ],
            out_specs=pl.BlockSpec((tile_rows, hidden), lambda i: (i, 0)),
        ),
        compiler_params=pltpu.CompilerParams(
            dimension_semantics=("parallel",),
            vmem_limit_bytes=vmem_limit,
        ),
    )(y2, g2, b2)

    if padded_rows != rows:
        out = out[:rows]
    return out.reshape(orig_shape)


def add_norm(y, gamma, beta):
    """LayerNorm over the last axis of y (any leading dims)."""
    hidden = y.shape[-1]
    rows = math.prod(y.shape[:-1]) if y.ndim > 1 else 1
    itemsize = jnp.dtype(y.dtype).itemsize
    tile_rows = _choose_tile_rows(rows, hidden, itemsize)
    return _add_norm_impl(y, gamma, beta, tile_rows=tile_rows)


if __name__ == "__main__":
    batch, seq, hidden = 2, 8, 32  # normalized_shape = hidden
    key = jax.random.PRNGKey(0)
    k_y, k_g, k_b = jax.random.split(key, 3)

    y = jax.random.normal(k_y, (batch, seq, hidden), dtype=jnp.float32)
    # PyTorch default init is gamma=1, beta=0; perturb deterministically so the
    # affine part of the kernel is actually exercised.
    gamma = 1.0 + 0.1 * jax.random.normal(k_g, (hidden,), dtype=jnp.float32)
    beta = 0.1 * jax.random.normal(k_b, (hidden,), dtype=jnp.float32)

    out = add_norm(y, gamma, beta)
    out = jax.block_until_ready(out)

    # Reference check against plain-JAX LayerNorm semantics.
    mean = jnp.mean(y, axis=-1, keepdims=True)
    var = jnp.mean((y - mean) ** 2, axis=-1, keepdims=True)
    ref = (y - mean) / jnp.sqrt(var + EPS) * gamma + beta
    assert jnp.allclose(out, ref, atol=1e-5, rtol=1e-5), "mismatch vs reference"

    print("KERNEL_OK")
</pallas_src>

<mosaic_0001>
module attributes {stable_mosaic.version = 11 : i64} {
  func.func @_addnorm_kernel(%arg0: i32, %arg1: memref<8x32xf32, #tpu.memory_space<vmem>>, %arg2: memref<1x32xf32, #tpu.memory_space<vmem>>, %arg3: memref<1x32xf32, #tpu.memory_space<vmem>>, %arg4: memref<8x32xf32, #tpu.memory_space<vmem>>) attributes {dimension_semantics = [#tpu.dimension_semantics<parallel>], iteration_bounds = array<i64: 2>, scalar_prefetch = 0 : i64, scratch_operands = 0 : i64, tpu.core_type = #tpu.core_type<tc>, window_params = [{transform_indices = @transform_0, window_bounds = array<i64: 8, 32>}, {pipeline_mode = #tpu.pipeline_mode<synchronous>, transform_indices = @transform_1, window_bounds = array<i64: 1, 32>}, {pipeline_mode = #tpu.pipeline_mode<synchronous>, transform_indices = @transform_2, window_bounds = array<i64: 1, 32>}, {transform_indices = @transform_3, window_bounds = array<i64: 8, 32>}]} {
    %c0 = arith.constant 0 : index
    %c0_0 = arith.constant 0 : index
    %0 = vector.load %arg1[%c0, %c0_0] : memref<8x32xf32, #tpu.memory_space<vmem>>, vector<8x32xf32>
    %c0_1 = arith.constant 0 : index
    %c0_2 = arith.constant 0 : index
    %1 = vector.load %arg2[%c0_1, %c0_2] : memref<1x32xf32, #tpu.memory_space<vmem>>, vector<1x32xf32>
    %c0_3 = arith.constant 0 : index
    %c0_4 = arith.constant 0 : index
    %2 = vector.load %arg3[%c0_3, %c0_4] : memref<1x32xf32, #tpu.memory_space<vmem>>, vector<1x32xf32>
    %cst = arith.constant dense<0.000000e+00> : vector<8xf32>
    %3 = vector.multi_reduction <add>, %0, %cst [1] : vector<8x32xf32> to vector<8xf32>
    %4 = vector.shape_cast %3 : vector<8xf32> to vector<8x1xf32>
    %cst_5 = arith.constant 3.200000e+01 : f32
    %5 = vector.broadcast %cst_5 : f32 to vector<8x1xf32>
    %6 = arith.divf %4, %5 : vector<8x1xf32>
    %7 = vector.broadcast %6 : vector<8x1xf32> to vector<8x32xf32>
    %8 = arith.subf %0, %7 : vector<8x32xf32>
    %9 = arith.mulf %8, %8 : vector<8x32xf32>
    %cst_6 = arith.constant dense<0.000000e+00> : vector<8xf32>
    %10 = vector.multi_reduction <add>, %9, %cst_6 [1] : vector<8x32xf32> to vector<8xf32>
    %11 = vector.shape_cast %10 : vector<8xf32> to vector<8x1xf32>
    %cst_7 = arith.constant 3.200000e+01 : f32
    %12 = vector.broadcast %cst_7 : f32 to vector<8x1xf32>
    %13 = arith.divf %11, %12 : vector<8x1xf32>
    %cst_8 = arith.constant 9.99999974E-6 : f32
    %14 = vector.broadcast %cst_8 : f32 to vector<8x1xf32>
    %15 = arith.addf %13, %14 : vector<8x1xf32>
    %16 = math.rsqrt %15 : vector<8x1xf32>
    %17 = vector.broadcast %16 : vector<8x1xf32> to vector<8x32xf32>
    %18 = vector.broadcast %1 : vector<1x32xf32> to vector<8x32xf32>
    %19 = arith.mulf %17, %18 : vector<8x32xf32>
    %20 = arith.mulf %8, %19 : vector<8x32xf32>
    %21 = vector.broadcast %2 : vector<1x32xf32> to vector<8x32xf32>
    %22 = arith.addf %20, %21 : vector<8x32xf32>
    %c0_9 = arith.constant 0 : index
    %c0_10 = arith.constant 0 : index
    %23 = vector.load %arg4[%c0_9, %c0_10] : memref<8x32xf32, #tpu.memory_space<vmem>>, vector<8x32xf32>
    tpu.vector_store %arg4[%c0_9, %c0_10], %22 {strides = array<i32>} : memref<8x32xf32, #tpu.memory_space<vmem>>, vector<8x32xf32>,
    return
  }
  func.func @transform_0(%arg0: i32) -> (i32, i32) {
    %c0_i32 = arith.constant 0 : i32
    %c0_i32_0 = arith.constant 0 : i32
    return %arg0, %c0_i32 : i32, i32
  }
  func.func @transform_1(%arg0: i32) -> (i32, i32) {
    %c0_i32 = arith.constant 0 : i32
    %c0_i32_0 = arith.constant 0 : i32
    %c0_i32_1 = arith.constant 0 : i32
    return %c0_i32, %c0_i32_0 : i32, i32
  }
  func.func @transform_2(%arg0: i32) -> (i32, i32) {
    %c0_i32 = arith.constant 0 : i32
    %c0_i32_0 = arith.constant 0 : i32
    %c0_i32_1 = arith.constant 0 : i32
    return %c0_i32, %c0_i32_0 : i32, i32
  }
  func.func @transform_3(%arg0: i32) -> (i32, i32) {
    %c0_i32 = arith.constant 0 : i32
    %c0_i32_0 = arith.constant 0 : i32
    return %arg0, %c0_i32 : i32, i32
  }
}

</mosaic_0001>

<llo_original>
// kernel: _add_norm_impl.1
$region0: #{_add_norm_impl.1}
  #allocation0 [shape = 'u32[]', space=smem, size = 0x4, offset = 0x4, fixed_abs, tag = 'smem constant byte address 0x4 - core index']
  #allocation1 [shape = 'u32[72,128]{1,0:T(1,128)}', space=vmem, size = 0x9000, scoped, tag = 'internal scratch']
  %s0 = inlined_call_operand.hbm [shape: f32[16,32], index: 0, kind: input, shape index: {}]
  %s1 = inlined_call_operand.vmem [shape: f32[1,32], index: 1, kind: input, shape index: {}]
  %s2 = inlined_call_operand.vmem [shape: f32[1,32], index: 2, kind: input, shape index: {}]
  %s3 = inlined_call_operand.hbm [shape: f32[16,32], index: 3, kind: output, shape index: {}]
  %s4 = sld [smem:[#allocation0]]
  $region49: #{_add_norm_impl.1} parent=0
    _
  %s6 = ssub.s32 1, %s4
  %s7 = scalar_select 0, %s6, %s4
  $region1: #{_add_norm_impl.1} parent=0
    #allocation2 [shape = 'u8[8192]{0}', space=vmem, size = 0x2000, scoped, tag = 'input window, operand 0']
    #allocation3 [shape = 's32[2]{0}', space=sflag, size = 0x8, scoped, tag = 'scoped memory for _add_norm_impl.1']
    #allocation4 [shape = 's32[2]{0}', space=sflag, size = 0x8, scoped, tag = 'scoped memory for _add_norm_impl.1']
    #allocation5 [shape = 'u8[8192]{0}', space=vmem, size = 0x2000, scoped, tag = 'output window, operand 0']
    %8 = vsyncpa [#allocation3], 0
    %s9 = scalar_lea.sflag [#allocation3], 1
    %10 = vsyncpa %s9, 0
    %11 = vsyncpa [#allocation4], 0
    %s12 = scalar_lea.sflag [#allocation4], 1
    %13 = vsyncpa %s12, 0
    loop: start=0, step=1, limit=4
    $region2: #{_add_norm_impl.1} parent=1 // loop_pre_header
      _
    $region3: #{_add_norm_impl.1} parent=1 // loop_header
      %s15 = sphi 0, %s19
      %p16 = scmp.ge.s32.totalorder %s15, 4
      %s25 = sphi 0, %s27
      %s28 = sphi 0, %s25
      %s29 = sphi 0, %s28
      %s45 = sphi 0, %s29
      %s49 = sphi 0, %s49
      %s51 = sphi 0, %s49
      %s52 = sphi 0, %s51
      %s66 = sphi 0, %s52
      %s70 = sphi 0, %s70
      %s72 = sphi 0, %s70
      %s73 = sphi 0, %s72
      %s87 = sphi 0, %s73
      %s93 = sphi 0, %s95
      %s96 = sphi 0, %s93
      %s97 = sphi 0, %s96
      %s113 = sphi 0, %s97
    $region4: #{_add_norm_impl.1} parent=1 // loop_header_branch
      %18 = sbr.rel (%p16) target = $region8
    $region5: #{_add_norm_impl.1} parent=1 // loop_body
      %s20 = ssub.s32 %s15, 1
      %s21 = ssub.s32 %s15, 2
      %s22 = sadd.s32 %s15, 1
      %s23 = ssub.s32 %s15, %s22
      %p24 = scmp.eq.s32.totalorder %s23, 0
      %s26 = sadd.s32 %s25, 1
      %s27 = scalar_select %p24, %s25, %s26
      %p30 = pneg %p24
      %p31 = scmp.eq.s32.totalorder %s15, 1
      %p32 = por %p30, %p31
      %p33 = scmp.ne.s32.totalorder %s25, %s28
      %p34 = scmp.eq.s32.totalorder %s15, 0
      %p35 = por %p33, %p34
      %p36 = scmp.ne.s32.totalorder %s25, %s28
      %p37 = scmp.eq.s32.totalorder %s20, 1
      %p38 = por %p36, %p37
      %p39 = scmp.ne.s32.totalorder %s28, %s29
      %p40 = scmp.eq.s32.totalorder %s20, 0
      %p41 = por %p39, %p40
      %p42 = scmp.ne.s32.totalorder %s28, %s29
      %p43 = scmp.eq.s32.totalorder %s21, 1
      %p44 = por %p42, %p43
      %p46 = scmp.ne.s32.totalorder %s29, %s45
      %p47 = scmp.eq.s32.totalorder %s21, 0
      %p48 = por %p46, %p47
      %s50 = sadd.s32 %s49, 1
      %p53 = scmp.eq.s32.totalorder %s15, 1
      %p54 = scmp.ne.s32.totalorder %s49, %s51
      %p55 = scmp.eq.s32.totalorder %s15, 0
      %p56 = por %p54, %p55
      %p57 = scmp.ne.s32.totalorder %s49, %s51
      %p58 = scmp.eq.s32.totalorder %s20, 1
      %p59 = por %p57, %p58
      %p60 = scmp.ne.s32.totalorder %s51, %s52
      %p61 = scmp.eq.s32.totalorder %s20, 0
      %p62 = por %p60, %p61
      %p63 = scmp.ne.s32.totalorder %s51, %s52
      %p64 = scmp.eq.s32.totalorder %s21, 1
      %p65 = por %p63, %p64
      %p67 = scmp.ne.s32.totalorder %s52, %s66
      %p68 = scmp.eq.s32.totalorder %s21, 0
      %p69 = por %p67, %p68
      %s71 = sadd.s32 %s70, 1
      %p74 = scmp.eq.s32.totalorder %s15, 1
      %p75 = scmp.ne.s32.totalorder %s70, %s72
      %p76 = scmp.eq.s32.totalorder %s15, 0
      %p77 = por %p75, %p76
      %p78 = scmp.ne.s32.totalorder %s70, %s72
      %p79 = scmp.eq.s32.totalorder %s20, 1
      %p80 = por %p78, %p79
      %p81 = scmp.ne.s32.totalorder %s72, %s73
      %p82 = scmp.eq.s32.totalorder %s20, 0
      %p83 = por %p81, %p82
      %p84 = scmp.ne.s32.totalorder %s72, %s73
      %p85 = scmp.eq.s32.totalorder %s21, 1
      %p86 = por %p84, %p85
      %p88 = scmp.ne.s32.totalorder %s73, %s87
      %p89 = scmp.eq.s32.totalorder %s21, 0
      %p90 = por %p88, %p89
      %s91 = ssub.s32 %s15, %s22
      %p92 = scmp.eq.s32.totalorder %s91, 0
      %s94 = sadd.s32 %s93, 1
      %s95 = scalar_select %p92, %s93, %s94
      %p98 = pneg %p92
      %p99 = scmp.eq.s32.totalorder %s15, 1
      %p100 = por %p98, %p99
      %p101 = scmp.ne.s32.totalorder %s93, %s96
      %p102 = scmp.eq.s32.totalorder %s15, 0
      %p103 = por %p101, %p102
      %p104 = scmp.ne.s32.totalorder %s93, %s96
      %p105 = scmp.eq.s32.totalorder %s20, 1
      %p106 = por %p104, %p105
      %p107 = scmp.ne.s32.totalorder %s96, %s97
      %p108 = scmp.eq.s32.totalorder %s20, 0
      %p109 = por %p107, %p108
      %p110 = scmp.ne.s32.totalorder %s96, %s97
      %p111 = scmp.eq.s32.totalorder %s21, 1
      %p112 = por %p110, %p111
      %p114 = scmp.ne.s32.totalorder %s97, %s113
      %p115 = scmp.eq.s32.totalorder %s21, 0
      %p116 = por %p114, %p115
      %p117 = scmp.le.s32.totalorder 1, %s15
      %p118 = scmp.lt.s32.totalorder %s15, 3
      %p119 = pnand %p117, %p118
      %p120 = pneg %p119
      // Predicated region
      $region9: #{_add_norm_impl.1} parent=5 // pred_check
        _
      $region10: #{_add_norm_impl.1} parent=5 // pred_check_branch
        %122 = sbr.rel (%p119) target = $region12
      $region11: #{_add_norm_impl.1} parent=5 // pred_region
        %s123 = ssub.s32 %s15, 1
        // Predicated region
        $region13: #{_add_norm_impl.1} parent=11 // pred_check
          %p124 = pneg %p62
        $region14: #{_add_norm_impl.1} parent=11 // pred_check_branch
          %126 = sbr.rel (%p124) target = $region16
        $region15: #{_add_norm_impl.1} parent=11 // pred_region
          _
        $region16: #{_add_norm_impl.1} parent=11 // pred_fallthru
          _
        // Predicated region
        $region17: #{_add_norm_impl.1} parent=11 // pred_check
          %p127 = pneg %p83
        $region18: #{_add_norm_impl.1} parent=11 // pred_check_branch
          %129 = sbr.rel (%p127) target = $region20
        $region19: #{_add_norm_impl.1} parent=11 // pred_region
          _
        $region20: #{_add_norm_impl.1} parent=11 // pred_fallthru
          _
      $region12: #{_add_norm_impl.1} parent=5 // pred_fallthru
        _
      %p130 = scmp.lt.s32.totalorder %s15, 2
      // Predicated region
      $region21: #{_add_norm_impl.1} parent=5 // pred_check
        %p131 = pneg %p130
      $region22: #{_add_norm_impl.1} parent=5 // pred_check_branch
        %133 = sbr.rel (%p131) target = $region24
      $region23: #{_add_norm_impl.1} parent=5 // pred_region
        // Predicated region
        $region25: #{_add_norm_impl.1} parent=23 // pred_check
          %p134 = pneg %p35
        $region26: #{_add_norm_impl.1} parent=23 // pred_check_branch
          %136 = sbr.rel (%p134) target = $region28
        $region27: #{_add_norm_impl.1} parent=23 // pred_region
          %s137 = sand.u32 %s25, 1
          %s138 = scalar_lea.sflag [#allocation3], %s137
          %s139 = sand.u32 %s25, 1
          %s140 = smul.addr %s139, 8
          %s141 = scalar_lea.vmem [#allocation2], %s140
          %143 = vsyncadd %s138, 0
          %s144 = smul.addr %s15, 8
          %s145 = scalar_lea.hbm %s0, %s144
          %s147 = sshll.u32 %s145, 4
          %s148 = int_to_ptr.hbm [resolvable:$true] %s147
          %s149 = sshll.u32 %s141, 4
          %s150 = int_to_ptr.vmem [resolvable:$true] %s149
          %152 = dma.hbm_to_vmem [thread:$0]  %s148, 128, %s150, %s138
        $region28: #{_add_norm_impl.1} parent=23 // pred_fallthru
          _
      $region24: #{_add_norm_impl.1} parent=5 // pred_fallthru
        _
      %p153 = scmp.le.s32.totalorder 1, %s15
      %p154 = scmp.lt.s32.totalorder %s15, 3
      %p155 = pnand %p153, %p154
      %p156 = pneg %p155
      // Predicated region
      $region29: #{_add_norm_impl.1} parent=5 // pred_check
        _
      $region30: #{_add_norm_impl.1} parent=5 // pred_check_branch
        %158 = sbr.rel (%p155) target = $region32
      $region31: #{_add_norm_impl.1} parent=5 // pred_region
        %s159 = ssub.s32 %s15, 1
        %s160 = sand.u32 %s28, 1
        %s161 = scalar_lea.sflag [#allocation3], %s160
        %s162 = sand.u32 %s28, 1
        %s163 = smul.addr %s162, 8
        %s164 = scalar_lea.vmem [#allocation2], %s163
        // Predicated region
        $region33: #{_add_norm_impl.1} parent=31 // pred_check
          %p165 = pneg %p41
        $region34: #{_add_norm_impl.1} parent=31 // pred_check_branch
          %167 = sbr.rel (%p165) target = $region36
        $region35: #{_add_norm_impl.1} parent=31 // pred_region
          %169 = dma.done %s161, 128
        $region36: #{_add_norm_impl.1} parent=31 // pred_fallthru
          _
        %s170 = sand.u32 %s28, 1
        %s171 = scalar_lea.sflag [#allocation3], %s170
        %s172 = sand.u32 %s28, 1
        %s173 = smul.addr %s172, 8
        %s174 = scalar_lea.vmem [#allocation2], %s173
        %p175 = pneg %p41
        %p176 = pneg %p38
        %p177 = pneg %p62
        %p178 = pneg %p59
        %p179 = pneg %p83
        %p180 = pneg %p80
        %p181 = pneg %p109
        %p182 = pneg %p106
        %s183 = sand.u32 %s96, 1
        %s184 = scalar_lea.sflag [#allocation4], %s183
        %s185 = sand.u32 %s96, 1
        %s186 = smul.addr %s185, 8
        %s187 = scalar_lea.vmem [#allocation5], %s186
        %v188 = vld [vmem:[%s164] sm:$0xff]
        %v189 = vld [vmem:[%s1] sm:$0x1]
        %v190 = vld [vmem:[%s2] sm:$0x1]
        %vm191 = vcmask 261120
        %v192 = vsel %vm191, %v188, 0.0
        %193 = vadd.xlane.f32.xlu0 %v192
        %v194 = vpop.xlane.xlu0 %193
        %v195 = vrcp.pop 32.0
        %v196 = vmul.f32 32.0, %v195
        %v197 = vsub.f32 1.0, %v196
        %v198 = vmul.f32 %v195, %v197
        %v199 = vadd.f32 %v195, %v198
        %vm200 = vweird.f32 %v195
        %v201 = vsel %vm200, %v195, %v199
        %v202 = vmul.f32 %v194, %v201
        %v203 = vsub.f32 %v188, %v202
        %v204 = vmul.f32 %v203, %v203
        %v205 = vsel %vm191, %v204, 0.0
        %206 = vadd.xlane.f32.xlu0 %v205
        %v207 = vpop.xlane.xlu0 %206
        %v208 = vmul.f32 %v207, %v201
        %v209 = vadd.f32 %v208, 1e-05
        %v210 = vrsqrt.pop %v209
        %v211 = vmul.f32 %v210, %v209
        %v212 = vmul.f32 %v211, %v210
        %v213 = vmul.f32 0.5, %v212
        %v214 = vsub.f32 1.5, %v213
        %v215 = vmul.f32 %v210, %v214
        %vm216 = vweird.f32 %v209
        %vm217 = vweird.f32 %v210
        %vm218 = vmor %vm216, %vm217
        %v219 = vsel %vm218, %v210, %v215
        %v221 = vperm.slane %v189, 0
        %v223 = vmul.f32 %v219, %v221
        %v224 = vmul.f32 %v203, %v223
        %v226 = vperm.slane %v190, 0
        %v228 = vadd.f32 %v224, %v226
        %229 = vst.msk [vmem:[%s187] sm:$0xff] %vm191, %v228
        %s230 = sand.u32 %s96, 1
        %s231 = scalar_lea.sflag [#allocation4], %s230
        %s232 = sand.u32 %s96, 1
        %s233 = smul.addr %s232, 8
        %s234 = scalar_lea.vmem [#allocation5], %s233
        // Predicated region
        $region37: #{_add_norm_impl.1} parent=31 // pred_check
          %p235 = pneg %p106
        $region38: #{_add_norm_impl.1} parent=31 // pred_check_branch
          %237 = sbr.rel (%p235) target = $region40
        $region39: #{_add_norm_impl.1} parent=31 // pred_region
          %239 = vsyncadd %s231, 0
          %s240 = smul.addr %s20, 8
          %s241 = scalar_lea.hbm %s3, %s240
          %s243 = sshll.u32 %s234, 4
          %s244 = int_to_ptr.vmem [resolvable:$true] %s243
          %s245 = sshll.u32 %s241, 4
          %s246 = int_to_ptr.hbm [resolvable:$true] %s245
          %248 = dma.vmem_to_hbm [thread:$0]  %s244, 128, %s246, %s231
        $region40: #{_add_norm_impl.1} parent=31 // pred_fallthru
          _
      $region32: #{_add_norm_impl.1} parent=5 // pred_fallthru
        _
      %p249 = scmp.le.s32.totalorder 2, %s15
      // Predicated region
      $region41: #{_add_norm_impl.1} parent=5 // pred_check
        %p250 = pneg %p249
      $region42: #{_add_norm_impl.1} parent=5 // pred_check_branch
        %252 = sbr.rel (%p250) target = $region44
      $region43: #{_add_norm_impl.1} parent=5 // pred_region
        %s253 = ssub.s32 %s15, 2
        // Predicated region
        $region45: #{_add_norm_impl.1} parent=43 // pred_check
          %p254 = pneg %p112
        $region46: #{_add_norm_impl.1} parent=43 // pred_check_branch
          %256 = sbr.rel (%p254) target = $region48
        $region47: #{_add_norm_impl.1} parent=43 // pred_region
          %s257 = sand.u32 %s97, 1
          %s258 = scalar_lea.sflag [#allocation4], %s257
          %s259 = sand.u32 %s97, 1
          %s260 = smul.addr %s259, 8
          %s261 = scalar_lea.vmem [#allocation5], %s260
          %263 = dma.done %s258, 128
        $region48: #{_add_norm_impl.1} parent=43 // pred_fallthru
          _
      $region44: #{_add_norm_impl.1} parent=5 // pred_fallthru
        _
    $region6: #{_add_norm_impl.1} parent=1 // loop_footer
      %s19 = sadd.s32 1, %s15
    $region7: #{_add_norm_impl.1} parent=1 // loop_footer_branch
      %14 = sbr.rel target = $region3
    $region8: #{_add_norm_impl.1} parent=1 // loop_exit
      _
    %264 = vsyncpa [#allocation3], 1
    %s265 = scalar_lea.sflag [#allocation3], 1
    %266 = vsyncpa %s265, 1
    %267 = vsyncpa [#allocation4], 1
    %s268 = scalar_lea.sflag [#allocation4], 1
    %269 = vsyncpa %s268, 1

</llo_original>
